<compile_context>
chip_gen: v7x
topology: tpu7x:2x2x1
jax: 0.10.0
libtpu: 0.0.40
codegen_flags: <defaults>
</compile_context>

<pallas_src>
import jax
import jax.numpy as jnp
from jax.experimental import pallas as pl
from jax.experimental.pallas import tpu as pltpu


def _round_up(x, m):
    return ((x + m - 1) // m) * m


def mlp3_kernel(x_ref, w1_ref, b1_ref, w2_ref, b2_ref, w3_ref, b3_ref, o_ref):
    # Layer 1: bf16 MXU matmul, f32 accumulation, f32 bias + ReLU.
    h1 = jnp.dot(x_ref[...], w1_ref[...], preferred_element_type=jnp.float32)
    h1 = jnp.maximum(h1 + b1_ref[...], 0.0)

    # Layer 2: cast activations back to bf16 for the MXU, accumulate in f32.
    h2 = jnp.dot(h1.astype(jnp.bfloat16), w2_ref[...],
                 preferred_element_type=jnp.float32)
    h2 = jnp.maximum(h2 + b2_ref[...], 0.0)

    # Layer 3 (out_features == 1): elementwise mul + lane reduction (VPU/XLU)
    # instead of a 1-column MXU matmul; write lane-dense as a (1, tile_b) row.
    out = jnp.sum(h2 * w3_ref[...], axis=-1)            # (tile_b,)
    o_ref[...] = (out.reshape(1, -1) + b3_ref[...]).astype(o_ref.dtype)


def _choose_tile(B, tile_b):
    # Lane-dense output => tile must be a multiple of 128.
    tile_b = max(128, (tile_b // 128) * 128)
    padded = _round_up(B, 128)
    # Never tile beyond the padded batch.
    tile_b = min(tile_b, padded)
    # Keep >=2 grid steps when the batch allows it (v7x has 2 TensorCores).
    if padded // tile_b < 2 and padded >= 256:
        tile_b = _round_up(padded // 2, 128)
    return tile_b


def nn_3l_forward(x, w1, b1, w2, b2, w3, b3, *, tile_b=512):
    """Pallas implementation of NN_3l.forward.

    x: (B, n_inputs) f32
    w1: (n_inputs, n1), b1: (n1,)   (weights pre-transposed vs torch nn.Linear)
    w2: (n1, n2),       b2: (n2,)
    w3: (n2, 1),        b3: (1,)
    returns: (B, 1) f32
    """
    B, n_in = x.shape
    n1 = w1.shape[1]
    n2 = w2.shape[1]

    tile_b = _choose_tile(B, tile_b)
    padded_B = _round_up(B, tile_b)
    num_tiles = padded_B // tile_b

    x_p = x if padded_B == B else jnp.pad(x, ((0, padded_B - B), (0, 0)))

    # bf16 streaming inputs (halves dominant HBM traffic), f32 biases / w3 row.
    x_bf = x_p.astype(jnp.bfloat16)
    w1_bf = w1.astype(jnp.bfloat16)
    w2_bf = w2.astype(jnp.bfloat16)
    w3_row = w3.reshape(1, n2).astype(jnp.float32)
    b1_2d = b1.reshape(1, n1).astype(jnp.float32)
    b2_2d = b2.reshape(1, n2).astype(jnp.float32)
    b3_2d = b3.reshape(1, 1).astype(jnp.float32)

    flops = 2 * padded_B * (n_in * n1 + n1 * n2 + n2)
    bytes_accessed = (
        x_bf.size * 2                      # bf16 activations in
        + padded_B * 4                     # f32 output
        + (w1_bf.size + w2_bf.size) * 2    # bf16 weights
        + (w3_row.size + b1_2d.size + b2_2d.size + b3_2d.size) * 4
    )

    out_row = pl.pallas_call(
        mlp3_kernel,
        out_shape=jax.ShapeDtypeStruct((1, padded_B), jnp.float32),
        grid_spec=pltpu.PrefetchScalarGridSpec(
            num_scalar_prefetch=0,
            grid=(num_tiles,),
            in_specs=[
                # x: tiled over the batch axis
                pl.BlockSpec((tile_b, n_in), lambda i: (i, 0)),
                # weights / biases: whole (tiny) arrays resident every step
                pl.BlockSpec((n_in, n1), lambda i: (0, 0)),
                pl.BlockSpec((1, n1), lambda i: (0, 0)),
                pl.BlockSpec((n1, n2), lambda i: (0, 0)),
                pl.BlockSpec((1, n2), lambda i: (0, 0)),
                pl.BlockSpec((1, n2), lambda i: (0, 0)),
                pl.BlockSpec((1, 1), lambda i: (0, 0)),
            ],
            # Lane-dense output slab: (1, tile_b) block over a (1, padded_B) array.
            out_specs=pl.BlockSpec((1, tile_b), lambda i: (0, i)),
        ),
        compiler_params=pltpu.CompilerParams(
            dimension_semantics=("parallel",),
        ),
        cost_estimate=pl.CostEstimate(
            flops=flops, transcendentals=0, bytes_accessed=bytes_accessed),
    )(x_bf, w1_bf, b1_2d, w2_bf, b2_2d, w3_row, b3_2d)

    return out_row.reshape(padded_B, 1)[:B]


def nn_3l_ref(x, w1, b1, w2, b2, w3, b3, *, matmul_dtype=jnp.float32):
    def mm(a, b):
        return jnp.dot(a.astype(matmul_dtype), b.astype(matmul_dtype),
                       preferred_element_type=jnp.float32)
    h1 = jnp.maximum(mm(x, w1) + b1, 0.0)
    h2 = jnp.maximum(mm(h1, w2) + b2, 0.0)
    return jnp.sum(h2 * w3.reshape(1, -1), axis=-1, keepdims=True) + b3


if __name__ == "__main__":
    # Small shapes consistent with the module: n_inputs=32, n1=64, n2=32, out=1.
    # B=200 is deliberately not a multiple of the tile -> exercises pad + slice,
    # and with tile_b=128 gives a 2-step grid (both v7x TensorCores usable).
    n_inputs, n1, n2 = 32, 64, 32
    B = 200

    key = jax.random.PRNGKey(0)
    kx, k1, kb1, k2, kb2, k3, kb3 = jax.random.split(key, 7)

    x = jax.random.normal(kx, (B, n_inputs), dtype=jnp.float32)

    def init_linear(kw, kb, fan_in, fan_out):
        bound = 1.0 / float(fan_in) ** 0.5
        w = jax.random.uniform(kw, (fan_in, fan_out), jnp.float32, -bound, bound)
        b = jax.random.uniform(kb, (fan_out,), jnp.float32, -bound, bound)
        return w, b

    w1, b1 = init_linear(k1, kb1, n_inputs, n1)
    w2, b2 = init_linear(k2, kb2, n1, n2)
    w3, b3 = init_linear(k3, kb3, n2, 1)

    out = nn_3l_forward(x, w1, b1, w2, b2, w3, b3, tile_b=128)
    out = jax.block_until_ready(out)
    assert out.shape == (B, 1)

    # Tight check vs a reference with identical bf16-matmul / f32-accum semantics.
    ref_bf16 = nn_3l_ref(x, w1, b1, w2, b2, w3, b3, matmul_dtype=jnp.bfloat16)
    assert jnp.allclose(out, ref_bf16, atol=1e-4, rtol=1e-4), "mismatch vs bf16 ref"

    # Loose check vs the full-f32 PyTorch-style reference (bf16 streaming drift).
    ref_f32 = nn_3l_ref(x, w1, b1, w2, b2, w3, b3, matmul_dtype=jnp.float32)
    assert jnp.allclose(out, ref_f32, atol=5e-2, rtol=5e-2), "mismatch vs f32 ref"

    print("KERNEL_OK")
</pallas_src>

<mosaic_0001>
module attributes {stable_mosaic.version = 11 : i64} {
  func.func @mlp3_kernel(%arg0: i32, %arg1: memref<128x32xbf16, #tpu.memory_space<vmem>>, %arg2: memref<32x64xbf16, #tpu.memory_space<vmem>>, %arg3: memref<1x64xf32, #tpu.memory_space<vmem>>, %arg4: memref<64x32xbf16, #tpu.memory_space<vmem>>, %arg5: memref<1x32xf32, #tpu.memory_space<vmem>>, %arg6: memref<1x32xf32, #tpu.memory_space<vmem>>, %arg7: memref<1x1xf32, #tpu.memory_space<vmem>>, %arg8: memref<1x128xf32, #tpu.memory_space<vmem>>) attributes {dimension_semantics = [#tpu.dimension_semantics<parallel>], iteration_bounds = array<i64: 2>, scalar_prefetch = 0 : i64, scratch_operands = 0 : i64, tpu.core_type = #tpu.core_type<tc>, window_params = [{transform_indices = @transform_0, window_bounds = array<i64: 128, 32>}, {pipeline_mode = #tpu.pipeline_mode<synchronous>, transform_indices = @transform_1, window_bounds = array<i64: 32, 64>}, {pipeline_mode = #tpu.pipeline_mode<synchronous>, transform_indices = @transform_2, window_bounds = array<i64: 1, 64>}, {pipeline_mode = #tpu.pipeline_mode<synchronous>, transform_indices = @transform_3, window_bounds = array<i64: 64, 32>}, {pipeline_mode = #tpu.pipeline_mode<synchronous>, transform_indices = @transform_4, window_bounds = array<i64: 1, 32>}, {pipeline_mode = #tpu.pipeline_mode<synchronous>, transform_indices = @transform_5, window_bounds = array<i64: 1, 32>}, {pipeline_mode = #tpu.pipeline_mode<synchronous>, transform_indices = @transform_6, window_bounds = array<i64: 1, 1>}, {transform_indices = @transform_7, window_bounds = array<i64: 1, 128>}]} {
    %c0 = arith.constant 0 : index
    %c0_0 = arith.constant 0 : index
    %0 = vector.load %arg1[%c0, %c0_0] : memref<128x32xbf16, #tpu.memory_space<vmem>>, vector<128x32xbf16>
    %c0_1 = arith.constant 0 : index
    %c0_2 = arith.constant 0 : index
    %1 = vector.load %arg2[%c0_1, %c0_2] : memref<32x64xbf16, #tpu.memory_space<vmem>>, vector<32x64xbf16>
    %cst = arith.constant dense<0.000000e+00> : vector<128x64xf32>
    %2 = tpu.matmul %0, %1, %cst {dimension_numbers = #tpu.dot_dimension_numbers<[1], [0], [0], [1], [0, 0, 1, 1], [], []>} : vector<128x32xbf16>, vector<32x64xbf16>, vector<128x64xf32> -> vector<128x64xf32>
    %c0_3 = arith.constant 0 : index
    %c0_4 = arith.constant 0 : index
    %3 = vector.load %arg3[%c0_3, %c0_4] : memref<1x64xf32, #tpu.memory_space<vmem>>, vector<1x64xf32>
    %4 = vector.broadcast %3 : vector<1x64xf32> to vector<128x64xf32>
    %5 = arith.addf %2, %4 : vector<128x64xf32>
    %cst_5 = arith.constant 0.000000e+00 : f32
    %6 = vector.broadcast %cst_5 : f32 to vector<128x64xf32>
    %7 = arith.maximumf %5, %6 : vector<128x64xf32>
    %8 = arith.truncf %7 : vector<128x64xf32> to vector<128x64xbf16>
    %c0_6 = arith.constant 0 : index
    %c0_7 = arith.constant 0 : index
    %9 = vector.load %arg4[%c0_6, %c0_7] : memref<64x32xbf16, #tpu.memory_space<vmem>>, vector<64x32xbf16>
    %cst_8 = arith.constant dense<0.000000e+00> : vector<128x32xf32>
    %10 = tpu.matmul %8, %9, %cst_8 {dimension_numbers = #tpu.dot_dimension_numbers<[1], [0], [0], [1], [0, 0, 1, 1], [], []>} : vector<128x64xbf16>, vector<64x32xbf16>, vector<128x32xf32> -> vector<128x32xf32>
    %c0_9 = arith.constant 0 : index
    %c0_10 = arith.constant 0 : index
    %11 = vector.load %arg5[%c0_9, %c0_10] : memref<1x32xf32, #tpu.memory_space<vmem>>, vector<1x32xf32>
    %12 = vector.broadcast %11 : vector<1x32xf32> to vector<128x32xf32>
    %13 = arith.addf %10, %12 : vector<128x32xf32>
    %cst_11 = arith.constant 0.000000e+00 : f32
    %14 = vector.broadcast %cst_11 : f32 to vector<128x32xf32>
    %15 = arith.maximumf %13, %14 : vector<128x32xf32>
    %c0_12 = arith.constant 0 : index
    %c0_13 = arith.constant 0 : index
    %16 = vector.load %arg6[%c0_12, %c0_13] : memref<1x32xf32, #tpu.memory_space<vmem>>, vector<1x32xf32>
    %17 = vector.broadcast %16 : vector<1x32xf32> to vector<128x32xf32>
    %18 = arith.mulf %15, %17 : vector<128x32xf32>
    %cst_14 = arith.constant dense<0.000000e+00> : vector<128xf32>
    %19 = vector.multi_reduction <add>, %18, %cst_14 [1] : vector<128x32xf32> to vector<128xf32>
    %20 = vector.shape_cast %19 : vector<128xf32> to vector<1x128xf32>
    %c0_15 = arith.constant 0 : index
    %c0_16 = arith.constant 0 : index
    %21 = vector.load %arg7[%c0_15, %c0_16] : memref<1x1xf32, #tpu.memory_space<vmem>>, vector<1x1xf32>
    %22 = vector.broadcast %21 : vector<1x1xf32> to vector<1x128xf32>
    %23 = arith.addf %20, %22 : vector<1x128xf32>
    %c0_17 = arith.constant 0 : index
    %c0_18 = arith.constant 0 : index
    %24 = vector.load %arg8[%c0_17, %c0_18] : memref<1x128xf32, #tpu.memory_space<vmem>>, vector<1x128xf32>
    tpu.vector_store %arg8[%c0_17, %c0_18], %23 {strides = array<i32>} : memref<1x128xf32, #tpu.memory_space<vmem>>, vector<1x128xf32>,
    return
  }
  func.func @transform_0(%arg0: i32) -> (i32, i32) {
    %c0_i32 = arith.constant 0 : i32
    %c0_i32_0 = arith.constant 0 : i32
    return %arg0, %c0_i32 : i32, i32
  }
  func.func @transform_1(%arg0: i32) -> (i32, i32) {
    %c0_i32 = arith.constant 0 : i32
    %c0_i32_0 = arith.constant 0 : i32
    %c0_i32_1 = arith.constant 0 : i32
    return %c0_i32, %c0_i32_0 : i32, i32
  }
  func.func @transform_2(%arg0: i32) -> (i32, i32) {
    %c0_i32 = arith.constant 0 : i32
    %c0_i32_0 = arith.constant 0 : i32
    %c0_i32_1 = arith.constant 0 : i32
    return %c0_i32, %c0_i32_0 : i32, i32
  }
  func.func @transform_3(%arg0: i32) -> (i32, i32) {
    %c0_i32 = arith.constant 0 : i32
    %c0_i32_0 = arith.constant 0 : i32
    %c0_i32_1 = arith.constant 0 : i32
    return %c0_i32, %c0_i32_0 : i32, i32
  }
  func.func @transform_4(%arg0: i32) -> (i32, i32) {
    %c0_i32 = arith.constant 0 : i32
    %c0_i32_0 = arith.constant 0 : i32
    %c0_i32_1 = arith.constant 0 : i32
    return %c0_i32, %c0_i32_0 : i32, i32
  }
  func.func @transform_5(%arg0: i32) -> (i32, i32) {
    %c0_i32 = arith.constant 0 : i32
    %c0_i32_0 = arith.constant 0 : i32
    %c0_i32_1 = arith.constant 0 : i32
    return %c0_i32, %c0_i32_0 : i32, i32
  }
  func.func @transform_6(%arg0: i32) -> (i32, i32) {
    %c0_i32 = arith.constant 0 : i32
    %c0_i32_0 = arith.constant 0 : i32
    %c0_i32_1 = arith.constant 0 : i32
    return %c0_i32, %c0_i32_0 : i32, i32
  }
  func.func @transform_7(%arg0: i32) -> (i32, i32) {
    %c0_i32 = arith.constant 0 : i32
    %c0_i32_0 = arith.constant 0 : i32
    return %c0_i32, %arg0 : i32, i32
  }
}

</mosaic_0001>

<llo_original>
// kernel: tpu_custom_call.1
$region0: #{tpu_custom_call.1}
  #allocation0 [shape = 'u32[]', space=smem, size = 0x4, offset = 0x4, fixed_abs, tag = 'smem constant byte address 0x4 - core index']
  #allocation1 [shape = 'u32[144,128]{1,0:T(1,128)}', space=vmem, size = 0x12000, scoped, tag = 'internal scratch']
  #allocation2 [shape = 'f32[1,1]{1,0:T(1,128)S(1)}', space=vmem, size = 0x200, scoped, tag = 'scoped memory for tpu_custom_call.1']
  %s0 = inlined_call_operand.vmem [shape: bf16[256,32], index: 0, kind: input, shape index: {}]
  %s1 = inlined_call_operand.vmem [shape: bf16[32,64], index: 1, kind: input, shape index: {}]
  %s2 = inlined_call_operand.vmem [shape: f32[1,64], index: 2, kind: input, shape index: {}]
  %s3 = inlined_call_operand.vmem [shape: bf16[64,32], index: 3, kind: input, shape index: {}]
  %s4 = inlined_call_operand.vmem [shape: f32[1,32], index: 4, kind: input, shape index: {}]
  %s5 = inlined_call_operand.vmem [shape: f32[1,32], index: 5, kind: input, shape index: {}]
  %s6 = inlined_call_operand.<no memory space> [shape: f32[1,1], index: 6, kind: input, shape index: {}]
  %s7 = inlined_call_operand.hbm [shape: f32[1,256], index: 7, kind: output, shape index: {}]
  %s8 = sld [smem:[#allocation0]]
  $region61: #{tpu_custom_call.1} parent=0
    _
  %s10 = ssub.s32 1, %s8
  %s11 = scalar_select 0, %s10, %s8
  %v12 = vstv %s6
  %13 = vst [vmem:[#allocation2] sm:$0x1] %v12
  $region1: #{tpu_custom_call.1} parent=0
    #allocation3 [shape = 'u8[1024]{0}', space=vmem, size = 0x400, scoped, tag = 'output window, operand 0']
    #allocation4 [shape = 's32[2]{0}', space=sflag, size = 0x8, scoped, tag = 'scoped memory for tpu_custom_call.1']
    %14 = vsyncpa [#allocation4], 0
    %s15 = scalar_lea.sflag [#allocation4], 1
    %16 = vsyncpa %s15, 0
    loop: start=0, step=1, limit=4
    $region2: #{tpu_custom_call.1} parent=1 // loop_pre_header
      _
    $region3: #{tpu_custom_call.1} parent=1 // loop_header
      %s18 = sphi 0, %s22
      %p19 = scmp.ge.s32.totalorder %s18, 4
      %s28 = sphi 0, %s30
      %s31 = sphi 0, %s28
      %s32 = sphi 0, %s31
      %s48 = sphi 0, %s32
      %s52 = sphi 0, %s52
      %s54 = sphi 0, %s52
      %s55 = sphi 0, %s54
      %s69 = sphi 0, %s55
      %s73 = sphi 0, %s73
      %s75 = sphi 0, %s73
      %s76 = sphi 0, %s75
      %s90 = sphi 0, %s76
      %s94 = sphi 0, %s94
      %s96 = sphi 0, %s94
      %s97 = sphi 0, %s96
      %s111 = sphi 0, %s97
      %s115 = sphi 0, %s115
      %s117 = sphi 0, %s115
      %s118 = sphi 0, %s117
      %s132 = sphi 0, %s118
      %s136 = sphi 0, %s136
      %s138 = sphi 0, %s136
      %s139 = sphi 0, %s138
      %s153 = sphi 0, %s139
      %s157 = sphi 0, %s157
      %s159 = sphi 0, %s157
      %s160 = sphi 0, %s159
      %s174 = sphi 0, %s160
      %s180 = sphi 0, %s182
      %s183 = sphi 0, %s180
      %s184 = sphi 0, %s183
      %s200 = sphi 0, %s184
    $region4: #{tpu_custom_call.1} parent=1 // loop_header_branch
      %21 = sbr.rel (%p19) target = $region8
    $region5: #{tpu_custom_call.1} parent=1 // loop_body
      %s23 = ssub.s32 %s18, 1
      %s24 = ssub.s32 %s18, 2
      %s25 = sadd.s32 %s18, 1
      %s26 = ssub.s32 %s18, %s25
      %p27 = scmp.eq.s32.totalorder %s26, 0
      %s29 = sadd.s32 %s28, 1
      %s30 = scalar_select %p27, %s28, %s29
      %p33 = pneg %p27
      %p34 = scmp.eq.s32.totalorder %s18, 1
      %p35 = por %p33, %p34
      %p36 = scmp.ne.s32.totalorder %s28, %s31
      %p37 = scmp.eq.s32.totalorder %s18, 0
      %p38 = por %p36, %p37
      %p39 = scmp.ne.s32.totalorder %s28, %s31
      %p40 = scmp.eq.s32.totalorder %s23, 1
      %p41 = por %p39, %p40
      %p42 = scmp.ne.s32.totalorder %s31, %s32
      %p43 = scmp.eq.s32.totalorder %s23, 0
      %p44 = por %p42, %p43
      %p45 = scmp.ne.s32.totalorder %s31, %s32
      %p46 = scmp.eq.s32.totalorder %s24, 1
      %p47 = por %p45, %p46
      %p49 = scmp.ne.s32.totalorder %s32, %s48
      %p50 = scmp.eq.s32.totalorder %s24, 0
      %p51 = por %p49, %p50
      %s53 = sadd.s32 %s52, 1
      %p56 = scmp.eq.s32.totalorder %s18, 1
      %p57 = scmp.ne.s32.totalorder %s52, %s54
      %p58 = scmp.eq.s32.totalorder %s18, 0
      %p59 = por %p57, %p58
      %p60 = scmp.ne.s32.totalorder %s52, %s54
      %p61 = scmp.eq.s32.totalorder %s23, 1
      %p62 = por %p60, %p61
      %p63 = scmp.ne.s32.totalorder %s54, %s55
      %p64 = scmp.eq.s32.totalorder %s23, 0
      %p65 = por %p63, %p64
      %p66 = scmp.ne.s32.totalorder %s54, %s55
      %p67 = scmp.eq.s32.totalorder %s24, 1
      %p68 = por %p66, %p67
      %p70 = scmp.ne.s32.totalorder %s55, %s69
      %p71 = scmp.eq.s32.totalorder %s24, 0
      %p72 = por %p70, %p71
      %s74 = sadd.s32 %s73, 1
      %p77 = scmp.eq.s32.totalorder %s18, 1
      %p78 = scmp.ne.s32.totalorder %s73, %s75
      %p79 = scmp.eq.s32.totalorder %s18, 0
      %p80 = por %p78, %p79
      %p81 = scmp.ne.s32.totalorder %s73, %s75
      %p82 = scmp.eq.s32.totalorder %s23, 1
      %p83 = por %p81, %p82
      %p84 = scmp.ne.s32.totalorder %s75, %s76
      %p85 = scmp.eq.s32.totalorder %s23, 0
      %p86 = por %p84, %p85
      %p87 = scmp.ne.s32.totalorder %s75, %s76
      %p88 = scmp.eq.s32.totalorder %s24, 1
      %p89 = por %p87, %p88
      %p91 = scmp.ne.s32.totalorder %s76, %s90
      %p92 = scmp.eq.s32.totalorder %s24, 0
      %p93 = por %p91, %p92
      %s95 = sadd.s32 %s94, 1
      %p98 = scmp.eq.s32.totalorder %s18, 1
      %p99 = scmp.ne.s32.totalorder %s94, %s96
      %p100 = scmp.eq.s32.totalorder %s18, 0
      %p101 = por %p99, %p100
      %p102 = scmp.ne.s32.totalorder %s94, %s96
      %p103 = scmp.eq.s32.totalorder %s23, 1
      %p104 = por %p102, %p103
      %p105 = scmp.ne.s32.totalorder %s96, %s97
      %p106 = scmp.eq.s32.totalorder %s23, 0
      %p107 = por %p105, %p106
      %p108 = scmp.ne.s32.totalorder %s96, %s97
      %p109 = scmp.eq.s32.totalorder %s24, 1
      %p110 = por %p108, %p109
      %p112 = scmp.ne.s32.totalorder %s97, %s111
      %p113 = scmp.eq.s32.totalorder %s24, 0
      %p114 = por %p112, %p113
      %s116 = sadd.s32 %s115, 1
      %p119 = scmp.eq.s32.totalorder %s18, 1
      %p120 = scmp.ne.s32.totalorder %s115, %s117
      %p121 = scmp.eq.s32.totalorder %s18, 0
      %p122 = por %p120, %p121
      %p123 = scmp.ne.s32.totalorder %s115, %s117
      %p124 = scmp.eq.s32.totalorder %s23, 1
      %p125 = por %p123, %p124
      %p126 = scmp.ne.s32.totalorder %s117, %s118
      %p127 = scmp.eq.s32.totalorder %s23, 0
      %p128 = por %p126, %p127
      %p129 = scmp.ne.s32.totalorder %s117, %s118
      %p130 = scmp.eq.s32.totalorder %s24, 1
      %p131 = por %p129, %p130
      %p133 = scmp.ne.s32.totalorder %s118, %s132
      %p134 = scmp.eq.s32.totalorder %s24, 0
      %p135 = por %p133, %p134
      %s137 = sadd.s32 %s136, 1
      %p140 = scmp.eq.s32.totalorder %s18, 1
      %p141 = scmp.ne.s32.totalorder %s136, %s138
      %p142 = scmp.eq.s32.totalorder %s18, 0
      %p143 = por %p141, %p142
      %p144 = scmp.ne.s32.totalorder %s136, %s138
      %p145 = scmp.eq.s32.totalorder %s23, 1
      %p146 = por %p144, %p145
      %p147 = scmp.ne.s32.totalorder %s138, %s139
      %p148 = scmp.eq.s32.totalorder %s23, 0
      %p149 = por %p147, %p148
      %p150 = scmp.ne.s32.totalorder %s138, %s139
      %p151 = scmp.eq.s32.totalorder %s24, 1
      %p152 = por %p150, %p151
      %p154 = scmp.ne.s32.totalorder %s139, %s153
      %p155 = scmp.eq.s32.totalorder %s24, 0
      %p156 = por %p154, %p155
      %s158 = sadd.s32 %s157, 1
      %p161 = scmp.eq.s32.totalorder %s18, 1
      %p162 = scmp.ne.s32.totalorder %s157, %s159
      %p163 = scmp.eq.s32.totalorder %s18, 0
      %p164 = por %p162, %p163
      %p165 = scmp.ne.s32.totalorder %s157, %s159
      %p166 = scmp.eq.s32.totalorder %s23, 1
      %p167 = por %p165, %p166
      %p168 = scmp.ne.s32.totalorder %s159, %s160
      %p169 = scmp.eq.s32.totalorder %s23, 0
      %p170 = por %p168, %p169
      %p171 = scmp.ne.s32.totalorder %s159, %s160
      %p172 = scmp.eq.s32.totalorder %s24, 1
      %p173 = por %p171, %p172
      %p175 = scmp.ne.s32.totalorder %s160, %s174
      %p176 = scmp.eq.s32.totalorder %s24, 0
      %p177 = por %p175, %p176
      %s178 = ssub.s32 %s18, %s25
      %p179 = scmp.eq.s32.totalorder %s178, 0
      %s181 = sadd.s32 %s180, 1
      %s182 = scalar_select %p179, %s180, %s181
      %p185 = pneg %p179
      %p186 = scmp.eq.s32.totalorder %s18, 1
      %p187 = por %p185, %p186
      %p188 = scmp.ne.s32.totalorder %s180, %s183
      %p189 = scmp.eq.s32.totalorder %s18, 0
      %p190 = por %p188, %p189
      %p191 = scmp.ne.s32.totalorder %s180, %s183
      %p192 = scmp.eq.s32.totalorder %s23, 1
      %p193 = por %p191, %p192
      %p194 = scmp.ne.s32.totalorder %s183, %s184
      %p195 = scmp.eq.s32.totalorder %s23, 0
      %p196 = por %p194, %p195
      %p197 = scmp.ne.s32.totalorder %s183, %s184
      %p198 = scmp.eq.s32.totalorder %s24, 1
      %p199 = por %p197, %p198
      %p201 = scmp.ne.s32.totalorder %s184, %s200
      %p202 = scmp.eq.s32.totalorder %s24, 0
      %p203 = por %p201, %p202
      %p204 = scmp.le.s32.totalorder 1, %s18
      %p205 = scmp.lt.s32.totalorder %s18, 3
      %p206 = pnand %p204, %p205
      %p207 = pneg %p206
      // Predicated region
      $region9: #{tpu_custom_call.1} parent=5 // pred_check
        _
      $region10: #{tpu_custom_call.1} parent=5 // pred_check_branch
        %209 = sbr.rel (%p206) target = $region12
      $region11: #{tpu_custom_call.1} parent=5 // pred_region
        %s210 = ssub.s32 %s18, 1
        // Predicated region
        $region13: #{tpu_custom_call.1} parent=11 // pred_check
          %p211 = pneg %p65
        $region14: #{tpu_custom_call.1} parent=11 // pred_check_branch
          %213 = sbr.rel (%p211) target = $region16
        $region15: #{tpu_custom_call.1} parent=11 // pred_region
          _
        $region16: #{tpu_custom_call.1} parent=11 // pred_fallthru
          _
        // Predicated region
        $region17: #{tpu_custom_call.1} parent=11 // pred_check
          %p214 = pneg %p86
        $region18: #{tpu_custom_call.1} parent=11 // pred_check_branch
          %216 = sbr.rel (%p214) target = $region20
        $region19: #{tpu_custom_call.1} parent=11 // pred_region
          _
        $region20: #{tpu_custom_call.1} parent=11 // pred_fallthru
          _
        // Predicated region
        $region21: #{tpu_custom_call.1} parent=11 // pred_check
          %p217 = pneg %p107
        $region22: #{tpu_custom_call.1} parent=11 // pred_check_branch
          %219 = sbr.rel (%p217) target = $region24
        $region23: #{tpu_custom_call.1} parent=11 // pred_region
          _
        $region24: #{tpu_custom_call.1} parent=11 // pred_fallthru
          _
        // Predicated region
        $region25: #{tpu_custom_call.1} parent=11 // pred_check
          %p220 = pneg %p128
        $region26: #{tpu_custom_call.1} parent=11 // pred_check_branch
          %222 = sbr.rel (%p220) target = $region28
        $region27: #{tpu_custom_call.1} parent=11 // pred_region
          _
        $region28: #{tpu_custom_call.1} parent=11 // pred_fallthru
          _
        // Predicated region
        $region29: #{tpu_custom_call.1} parent=11 // pred_check
          %p223 = pneg %p149
        $region30: #{tpu_custom_call.1} parent=11 // pred_check_branch
          %225 = sbr.rel (%p223) target = $region32
        $region31: #{tpu_custom_call.1} parent=11 // pred_region
          _
        $region32: #{tpu_custom_call.1} parent=11 // pred_fallthru
          _
        // Predicated region
        $region33: #{tpu_custom_call.1} parent=11 // pred_check
          %p226 = pneg %p170
        $region34: #{tpu_custom_call.1} parent=11 // pred_check_branch
          %228 = sbr.rel (%p226) target = $region36
        $region35: #{tpu_custom_call.1} parent=11 // pred_region
          _
        $region36: #{tpu_custom_call.1} parent=11 // pred_fallthru
          _
      $region12: #{tpu_custom_call.1} parent=5 // pred_fallthru
        _
      %p229 = scmp.lt.s32.totalorder %s18, 2
      // Predicated region
      $region37: #{tpu_custom_call.1} parent=5 // pred_check
        %p230 = pneg %p229
      $region38: #{tpu_custom_call.1} parent=5 // pred_check_branch
        %232 = sbr.rel (%p230) target = $region40
      $region39: #{tpu_custom_call.1} parent=5 // pred_region
        // Predicated region
        $region41: #{tpu_custom_call.1} parent=39 // pred_check
          %p233 = pneg %p38
        $region42: #{tpu_custom_call.1} parent=39 // pred_check_branch
          %235 = sbr.rel (%p233) target = $region44
        $region43: #{tpu_custom_call.1} parent=39 // pred_region
          %s236 = smul.u32 16, %s18
          %p237 = scmp.lt.s32.totalorder %s236, 31
          %s238 = scalar_select %p237, %s236, 31
          %s239 = smul.addr %s238, 4
          %s240 = scalar_lea.vmem %s0, %s239
          %s241 = smul.u32 16, %s18
        $region44: #{tpu_custom_call.1} parent=39 // pred_fallthru
          _
      $region40: #{tpu_custom_call.1} parent=5 // pred_fallthru
        _
      %p242 = scmp.le.s32.totalorder 1, %s18
      %p243 = scmp.lt.s32.totalorder %s18, 3
      %p244 = pnand %p242, %p243
      %p245 = pneg %p244
      // Predicated region
      $region45: #{tpu_custom_call.1} parent=5 // pred_check
        _
      $region46: #{tpu_custom_call.1} parent=5 // pred_check_branch
        %247 = sbr.rel (%p244) target = $region48
      $region47: #{tpu_custom_call.1} parent=5 // pred_region
        %s248 = ssub.s32 %s18, 1
        %s249 = smul.u32 16, %s23
        %p250 = scmp.lt.s32.totalorder %s249, 31
        %s251 = scalar_select %p250, %s249, 31
        %s252 = smul.addr %s251, 4
        %s253 = scalar_lea.vmem %s0, %s252
        %p254 = pneg %p44
        %p255 = pneg %p41
        %p256 = pneg %p65
        %p257 = pneg %p62
        %p258 = pneg %p86
        %p259 = pneg %p83
        %p260 = pneg %p107
        %p261 = pneg %p104
        %p262 = pneg %p128
        %p263 = pneg %p125
        %p264 = pneg %p149
        %p265 = pneg %p146
        %p266 = pneg %p170
        %p267 = pneg %p167
        %p268 = pneg %p196
        %p269 = pneg %p193
        %s270 = sand.u32 %s183, 1
        %s271 = scalar_lea.sflag [#allocation4], %s270
        %s272 = sand.u32 %s183, 1
        %s273 = scalar_lea.vmem [#allocation3], %s272
        %s274 = smul.u32 16, %s23
        %p275 = scmp.lt.s32.totalorder %s274, 31
        %s276 = scalar_select %p275, %s274, 31
        %s277 = smul.addr %s276, 4
        %s278 = scalar_lea.vmem %s0, %s277
        %s279 = smul.u32 16, %s23
        %v281 = vld [vmem:[%s278] sm:$0xf]
        %v282 = vld [vmem:[%s278 + $0x4] sm:$0xf]
        %v283 = vld [vmem:[%s278 + $0x8] sm:$0xf]
        %v284 = vld [vmem:[%s278 + $0xc] sm:$0xf]
        %v285 = vld [vmem:[%s278 + $0x10] sm:$0xf]
        %v286 = vld [vmem:[%s278 + $0x14] sm:$0xf]
        %v287 = vld [vmem:[%s278 + $0x18] sm:$0xf]
        %v288 = vld [vmem:[%s278 + $0x1c] sm:$0xf]
        %v289 = vld [vmem:[%s278 + $0x20] sm:$0xf]
        %v290 = vld [vmem:[%s278 + $0x24] sm:$0xf]
        %v291 = vld [vmem:[%s278 + $0x28] sm:$0xf]
        %v292 = vld [vmem:[%s278 + $0x2c] sm:$0xf]
        %v293 = vld [vmem:[%s278 + $0x30] sm:$0xf]
        %v294 = vld [vmem:[%s278 + $0x34] sm:$0xf]
        %v295 = vld [vmem:[%s278 + $0x38] sm:$0xf]
        %v296 = vld [vmem:[%s278 + $0x3c] sm:$0xf]
        %v297 = vld [vmem:[%s1] sm:$0xf]
        %v298 = vld [vmem:[%s1 + $0x4] sm:$0xf]
        %v299 = vld [vmem:[%s1 + $0x8] sm:$0xf]
        %v300 = vld [vmem:[%s1 + $0xc] sm:$0xf]
        %v301 = vld [vmem:[%s2] sm:$0x1]
        %v303 = vlaneseq
        %v304 = vshrl.u32 %v303, 7
        %v305 = vsub.s32 0, %v304
        %v306 = vrot.slane %v301, %v305
        %v324 = vunpack.c.l.b16 %v281
        %v325 = vunpack.c.l.b16 %v282
        %v326 = vunpack.c.l.b16 %v283
        %v327 = vunpack.c.l.b16 %v284
        %v328 = vunpack.c.l.b16 %v285
        %v329 = vunpack.c.l.b16 %v286
        %v330 = vunpack.c.l.b16 %v287
        %v331 = vunpack.c.l.b16 %v288
        %v332 = vunpack.c.l.b16 %v289
        %v333 = vunpack.c.l.b16 %v290
        %v334 = vunpack.c.l.b16 %v291
        %v335 = vunpack.c.l.b16 %v292
        %v336 = vunpack.c.l.b16 %v293
        %v337 = vunpack.c.l.b16 %v294
        %v338 = vunpack.c.l.b16 %v295
        %v339 = vunpack.c.l.b16 %v296
        %v340 = vpack.c.b16 %v325, %v324
        %v341 = vpack.c.b16 %v327, %v326
        %v342 = vpack.c.b16 %v329, %v328
        %v343 = vpack.c.b16 %v331, %v330
        %v344 = vpack.c.b16 %v333, %v332
        %v345 = vpack.c.b16 %v335, %v334
        %v346 = vpack.c.b16 %v337, %v336
        %v347 = vpack.c.b16 %v339, %v338
        %v352 = vunpack.c.l.b16 %v297
        %v353 = vunpack.c.l.b16 %v298
        %v354 = vunpack.c.l.b16 %v299
        %v355 = vunpack.c.l.b16 %v300
        %v356 = vpack.c.b16 %v353, %v352
        %v357 = vpack.c.b16 %v355, %v354
        %vm360 = vcmask 261120
        %v362 = vsel %vm360, %v340, 0
        %v365 = vsel %vm360, %v341, 0
        %v368 = vsel %vm360, %v342, 0
        %v371 = vsel %vm360, %v343, 0
        %v374 = vsel %vm360, %v344, 0
        %v377 = vsel %vm360, %v345, 0
        %v380 = vsel %vm360, %v346, 0
        %v383 = vsel %vm360, %v347, 0
        %385 = vmatprep.subr.bf16.mxu0 0
        %386 = vmatpush1.bf16.msra.mxu0 %v356
        %387 = vmatprep.subr.bf16.mxu0 0
        %388 = vmatpush1.bf16.msra.mxu0 %v357
        %389 = vmatprep.subr.bf16.mxu0 0
        %390 = vmatpush1.bf16.msra.mxu0 0
        %391 = vmatprep.subr.bf16.mxu0 0
        %392 = vmatpush1.bf16.msra.mxu0 0
        %393 = vmatprep.subr.bf16.mxu0 0
        %394 = vmatpush1.bf16.msra.mxu0 0
        %395 = vmatprep.subr.bf16.mxu0 0
        %396 = vmatpush1.bf16.msra.mxu0 0
        %397 = vmatprep.subr.bf16.mxu0 0
        %398 = vmatpush1.bf16.msra.mxu0 0
        %399 = vmatprep.subr.bf16.mxu0 0
        %400 = vmatpush1.bf16.msra.mxu0 0
        %401 = vmatprep.subr.bf16.mxu0 0
        %402 = vmatpush1.bf16.msra.mxu0 0
        %403 = vmatprep.subr.bf16.mxu0 0
        %404 = vmatpush1.bf16.msra.mxu0 0
        %405 = vmatprep.subr.bf16.mxu0 0
        %406 = vmatpush1.bf16.msra.mxu0 0
        %407 = vmatprep.subr.bf16.mxu0 0
        %408 = vmatpush1.bf16.msra.mxu0 0
        %409 = vmatprep.subr.bf16.mxu0 0
        %410 = vmatpush1.bf16.msra.mxu0 0
        %411 = vmatprep.subr.bf16.mxu0 0
        %412 = vmatpush1.bf16.msra.mxu0 0
        %413 = vmatprep.subr.bf16.mxu0 0
        %414 = vmatpush1.bf16.msra.mxu0 0
        %415 = vmatprep.subr.bf16.mxu0 0
        %416 = vmatpush1.bf16.msra.mxu0 0
        %417 = vmatprep.mubr.bf16.mxu0 0
        %418 = vmatmul.mubr.bf16.gmra.mrb[0].mxu0 %v362
        %v419 = vpop.f32.mrb[0].mxu0
        %v420 = vadd.f32 %v306, %v419
        %v421 = vpop.f32.mrb[0].mxu0
        %v422 = vpop.f32.mrb[0].mxu0
        %v423 = vadd.f32 %v306, %v422
        %v424 = vpop.f32.mrb[0].mxu0
        %425 = vmatprep.mubr.bf16.mxu0 0
        %426 = vmatmul.mubr.bf16.gmra.mrb[0].mxu0 %v365
        %v427 = vpop.f32.mrb[0].mxu0
        %v428 = vadd.f32 %v306, %v427
        %v429 = vpop.f32.mrb[0].mxu0
        %v430 = vpop.f32.mrb[0].mxu0
        %v431 = vadd.f32 %v306, %v430
        %v432 = vpop.f32.mrb[0].mxu0
        %433 = vmatprep.mubr.bf16.mxu0 0
        %434 = vmatmul.mubr.bf16.gmra.mrb[0].mxu0 %v368
        %v435 = vpop.f32.mrb[0].mxu0
        %v436 = vadd.f32 %v306, %v435
        %v437 = vpop.f32.mrb[0].mxu0
        %v438 = vpop.f32.mrb[0].mxu0
        %v439 = vadd.f32 %v306, %v438
        %v440 = vpop.f32.mrb[0].mxu0
        %441 = vmatprep.mubr.bf16.mxu0 0
        %442 = vmatmul.mubr.bf16.gmra.mrb[0].mxu0 %v371
        %v443 = vpop.f32.mrb[0].mxu0
        %v444 = vadd.f32 %v306, %v443
        %v445 = vpop.f32.mrb[0].mxu0
        %v446 = vpop.f32.mrb[0].mxu0
        %v447 = vadd.f32 %v306, %v446
        %v448 = vpop.f32.mrb[0].mxu0
        %449 = vmatprep.mubr.bf16.mxu0 0
        %450 = vmatmul.mubr.bf16.gmra.mrb[0].mxu0 %v374
        %v451 = vpop.f32.mrb[0].mxu0
        %v452 = vadd.f32 %v306, %v451
        %v453 = vpop.f32.mrb[0].mxu0
        %v454 = vpop.f32.mrb[0].mxu0
        %v455 = vadd.f32 %v306, %v454
        %v456 = vpop.f32.mrb[0].mxu0
        %457 = vmatprep.mubr.bf16.mxu0 0
        %458 = vmatmul.mubr.bf16.gmra.mrb[0].mxu0 %v377
        %v459 = vpop.f32.mrb[0].mxu0
        %v460 = vadd.f32 %v306, %v459
        %v461 = vpop.f32.mrb[0].mxu0
        %v462 = vpop.f32.mrb[0].mxu0
        %v463 = vadd.f32 %v306, %v462
        %v464 = vpop.f32.mrb[0].mxu0
        %465 = vmatprep.mubr.bf16.mxu0 0
        %466 = vmatmul.mubr.bf16.gmra.mrb[0].mxu0 %v380
        %v467 = vpop.f32.mrb[0].mxu0
        %v468 = vadd.f32 %v306, %v467
        %v469 = vpop.f32.mrb[0].mxu0
        %v470 = vpop.f32.mrb[0].mxu0
        %v471 = vadd.f32 %v306, %v470
        %v472 = vpop.f32.mrb[0].mxu0
        %473 = vmatprep.mubr.bf16.mxu0 0
        %474 = vmatmul.mubr.bf16.gmra.mrb[0].mxu0 %v383
        %v475 = vpop.f32.mrb[0].mxu0
        %v476 = vadd.f32 %v306, %v475
        %v477 = vpop.f32.mrb[0].mxu0
        %v478 = vpop.f32.mrb[0].mxu0
        %v479 = vadd.f32 %v306, %v478
        %v480 = vpop.f32.mrb[0].mxu0
        %481 = vdwg.mxu0
        %v482 = vmax.f32 %v420, 0.0
        %v483 = vmax.f32 %v423, 0.0
        %v484 = vmax.f32 %v428, 0.0
        %v485 = vmax.f32 %v431, 0.0
        %v486 = vmax.f32 %v436, 0.0
        %v487 = vmax.f32 %v439, 0.0
        %v488 = vmax.f32 %v444, 0.0
        %v489 = vmax.f32 %v447, 0.0
        %v490 = vmax.f32 %v452, 0.0
        %v491 = vmax.f32 %v455, 0.0
        %v492 = vmax.f32 %v460, 0.0
        %v493 = vmax.f32 %v463, 0.0
        %v494 = vmax.f32 %v468, 0.0
        %v495 = vmax.f32 %v471, 0.0
        %v496 = vmax.f32 %v476, 0.0
        %v497 = vmax.f32 %v479, 0.0
        %v498 = vpack.c.bf16 %v483, %v482
        %v499 = vpack.c.bf16 %v485, %v484
        %v500 = vpack.c.bf16 %v487, %v486
        %v501 = vpack.c.bf16 %v489, %v488
        %v502 = vpack.c.bf16 %v491, %v490
        %v503 = vpack.c.bf16 %v493, %v492
        %v504 = vpack.c.bf16 %v495, %v494
        %v505 = vpack.c.bf16 %v497, %v496
        %v506 = vld [vmem:[%s3] sm:$0xf]
        %v507 = vld [vmem:[%s3 + $0x4] sm:$0xf]
        %v508 = vld [vmem:[%s3 + $0x8] sm:$0xf]
        %v509 = vld [vmem:[%s3 + $0xc] sm:$0xf]
        %v510 = vld [vmem:[%s3 + $0x10] sm:$0xf]
        %v511 = vld [vmem:[%s3 + $0x14] sm:$0xf]
        %v512 = vld [vmem:[%s3 + $0x18] sm:$0xf]
        %v513 = vld [vmem:[%s3 + $0x1c] sm:$0xf]
        %v514 = vld [vmem:[%s4] sm:$0x1]
        %v516 = vlaneseq
        %v517 = vshrl.u32 %v516, 7
        %v518 = vsub.s32 0, %v517
        %v519 = vrot.slane %v514, %v518
        %v529 = vunpack.c.l.b16 %v506
        %v530 = vunpack.c.l.b16 %v507
        %v531 = vunpack.c.l.b16 %v508
        %v532 = vunpack.c.l.b16 %v509
        %v533 = vunpack.c.l.b16 %v510
        %v534 = vunpack.c.l.b16 %v511
        %v535 = vunpack.c.l.b16 %v512
        %v536 = vunpack.c.l.b16 %v513
        %v537 = vpack.c.b16 %v530, %v529
        %v538 = vpack.c.b16 %v532, %v531
        %v539 = vpack.c.b16 %v534, %v533
        %v540 = vpack.c.b16 %v536, %v535
        %vm545 = vcmask 523264
        %v547 = vsel %vm545, %v498, 0
        %v550 = vsel %vm545, %v499, 0
        %v553 = vsel %vm545, %v500, 0
        %v556 = vsel %vm545, %v501, 0
        %v559 = vsel %vm545, %v502, 0
        %v562 = vsel %vm545, %v503, 0
        %v565 = vsel %vm545, %v504, 0
        %v568 = vsel %vm545, %v505, 0
        %570 = vmatprep.subr.bf16.mxu0 0
        %571 = vmatpush1.bf16.msra.mxu0 %v537
        %572 = vmatprep.subr.bf16.mxu0 0
        %573 = vmatpush1.bf16.msra.mxu0 %v538
        %574 = vmatprep.subr.bf16.mxu0 0
        %575 = vmatpush1.bf16.msra.mxu0 %v539
        %576 = vmatprep.subr.bf16.mxu0 0
        %577 = vmatpush1.bf16.msra.mxu0 %v540
        %578 = vmatprep.subr.bf16.mxu0 0
        %579 = vmatpush1.bf16.msra.mxu0 0
        %580 = vmatprep.subr.bf16.mxu0 0
        %581 = vmatpush1.bf16.msra.mxu0 0
        %582 = vmatprep.subr.bf16.mxu0 0
        %583 = vmatpush1.bf16.msra.mxu0 0
        %584 = vmatprep.subr.bf16.mxu0 0
        %585 = vmatpush1.bf16.msra.mxu0 0
        %586 = vmatprep.subr.bf16.mxu0 0
        %587 = vmatpush1.bf16.msra.mxu0 0
        %588 = vmatprep.subr.bf16.mxu0 0
        %589 = vmatpush1.bf16.msra.mxu0 0
        %590 = vmatprep.subr.bf16.mxu0 0
        %591 = vmatpush1.bf16.msra.mxu0 0
        %592 = vmatprep.subr.bf16.mxu0 0
        %593 = vmatpush1.bf16.msra.mxu0 0
        %594 = vmatprep.subr.bf16.mxu0 0
        %595 = vmatpush1.bf16.msra.mxu0 0
        %596 = vmatprep.subr.bf16.mxu0 0
        %597 = vmatpush1.bf16.msra.mxu0 0
        %598 = vmatprep.subr.bf16.mxu0 0
        %599 = vmatpush1.bf16.msra.mxu0 0
        %600 = vmatprep.subr.bf16.mxu0 0
        %601 = vmatpush1.bf16.msra.mxu0 0
        %602 = vmatprep.mubr.bf16.mxu0 0
        %603 = vmatmul.mubr.bf16.gmra.mrb[0].mxu0 %v547
        %v604 = vpop.f32.mrb[0].mxu0
        %v605 = vadd.f32 %v519, %v604
        %v606 = vpop.f32.mrb[0].mxu0
        %v607 = vpop.f32.mrb[0].mxu0
        %v608 = vadd.f32 %v519, %v607
        %v609 = vpop.f32.mrb[0].mxu0
        %610 = vmatprep.mubr.bf16.mxu0 0
        %611 = vmatmul.mubr.bf16.gmra.mrb[0].mxu0 %v550
        %v612 = vpop.f32.mrb[0].mxu0
        %v613 = vadd.f32 %v519, %v612
        %v614 = vpop.f32.mrb[0].mxu0
        %v615 = vpop.f32.mrb[0].mxu0
        %v616 = vadd.f32 %v519, %v615
        %v617 = vpop.f32.mrb[0].mxu0
        %618 = vmatprep.mubr.bf16.mxu0 0
        %619 = vmatmul.mubr.bf16.gmra.mrb[0].mxu0 %v553
        %v620 = vpop.f32.mrb[0].mxu0
        %v621 = vadd.f32 %v519, %v620
        %v622 = vpop.f32.mrb[0].mxu0
        %v623 = vpop.f32.mrb[0].mxu0
        %v624 = vadd.f32 %v519, %v623
        %v625 = vpop.f32.mrb[0].mxu0
        %626 = vmatprep.mubr.bf16.mxu0 0
        %627 = vmatmul.mubr.bf16.gmra.mrb[0].mxu0 %v556
        %v628 = vpop.f32.mrb[0].mxu0
        %v629 = vadd.f32 %v519, %v628
        %v630 = vpop.f32.mrb[0].mxu0
        %v631 = vpop.f32.mrb[0].mxu0
        %v632 = vadd.f32 %v519, %v631
        %v633 = vpop.f32.mrb[0].mxu0
        %634 = vmatprep.mubr.bf16.mxu0 0
        %635 = vmatmul.mubr.bf16.gmra.mrb[0].mxu0 %v559
        %v636 = vpop.f32.mrb[0].mxu0
        %v637 = vadd.f32 %v519, %v636
        %v638 = vpop.f32.mrb[0].mxu0
        %v639 = vpop.f32.mrb[0].mxu0
        %v640 = vadd.f32 %v519, %v639
        %v641 = vpop.f32.mrb[0].mxu0
        %642 = vmatprep.mubr.bf16.mxu0 0
        %643 = vmatmul.mubr.bf16.gmra.mrb[0].mxu0 %v562
        %v644 = vpop.f32.mrb[0].mxu0
        %v645 = vadd.f32 %v519, %v644
        %v646 = vpop.f32.mrb[0].mxu0
        %v647 = vpop.f32.mrb[0].mxu0
        %v648 = vadd.f32 %v519, %v647
        %v649 = vpop.f32.mrb[0].mxu0
        %650 = vmatprep.mubr.bf16.mxu0 0
        %651 = vmatmul.mubr.bf16.gmra.mrb[0].mxu0 %v565
        %v652 = vpop.f32.mrb[0].mxu0
        %v653 = vadd.f32 %v519, %v652
        %v654 = vpop.f32.mrb[0].mxu0
        %v655 = vpop.f32.mrb[0].mxu0
        %v656 = vadd.f32 %v519, %v655
        %v657 = vpop.f32.mrb[0].mxu0
        %658 = vmatprep.mubr.bf16.mxu0 0
        %659 = vmatmul.mubr.bf16.gmra.mrb[0].mxu0 %v568
        %v660 = vpop.f32.mrb[0].mxu0
        %v661 = vadd.f32 %v519, %v660
        %v662 = vpop.f32.mrb[0].mxu0
        %v663 = vpop.f32.mrb[0].mxu0
        %v664 = vadd.f32 %v519, %v663
        %v665 = vpop.f32.mrb[0].mxu0
        %666 = vdwg.mxu0
        %v667 = vmax.f32 %v605, 0.0
        %v668 = vmax.f32 %v608, 0.0
        %v669 = vmax.f32 %v613, 0.0
        %v670 = vmax.f32 %v616, 0.0
        %v671 = vmax.f32 %v621, 0.0
        %v672 = vmax.f32 %v624, 0.0
        %v673 = vmax.f32 %v629, 0.0
        %v674 = vmax.f32 %v632, 0.0
        %v675 = vmax.f32 %v637, 0.0
        %v676 = vmax.f32 %v640, 0.0
        %v677 = vmax.f32 %v645, 0.0
        %v678 = vmax.f32 %v648, 0.0
        %v679 = vmax.f32 %v653, 0.0
        %v680 = vmax.f32 %v656, 0.0
        %v681 = vmax.f32 %v661, 0.0
        %v682 = vmax.f32 %v664, 0.0
        %v683 = vld [vmem:[%s5] sm:$0x1]
        %v685 = vlaneseq
        %v686 = vshrl.u32 %v685, 7
        %v687 = vsub.s32 0, %v686
        %v688 = vrot.slane %v683, %v687
        %v690 = vmul.f32 %v667, %v688
        %v691 = vmul.f32 %v668, %v688
        %v692 = vmul.f32 %v669, %v688
        %v693 = vmul.f32 %v670, %v688
        %v694 = vmul.f32 %v671, %v688
        %v695 = vmul.f32 %v672, %v688
        %v696 = vmul.f32 %v673, %v688
        %v697 = vmul.f32 %v674, %v688
        %v698 = vmul.f32 %v675, %v688
        %v699 = vmul.f32 %v676, %v688
        %v700 = vmul.f32 %v677, %v688
        %v701 = vmul.f32 %v678, %v688
        %v702 = vmul.f32 %v679, %v688
        %v703 = vmul.f32 %v680, %v688
        %v704 = vmul.f32 %v681, %v688
        %v705 = vmul.f32 %v682, %v688
        %v706 = vsel %vm360, %v690, 0.0
        %707 = vadd.xlane.f32.xlu0 %v706
        %v708 = vpop.xlane.xlu0 %707
        %v709 = vsel %vm360, %v691, 0.0
        %710 = vadd.xlane.f32.xlu0 %v709
        %v711 = vpop.xlane.xlu0 %710
        %v712 = vsel %vm360, %v692, 0.0
        %713 = vadd.xlane.f32.xlu0 %v712
        %v714 = vpop.xlane.xlu0 %713
        %v715 = vsel %vm360, %v693, 0.0
        %716 = vadd.xlane.f32.xlu0 %v715
        %v717 = vpop.xlane.xlu0 %716
        %v718 = vsel %vm360, %v694, 0.0
        %719 = vadd.xlane.f32.xlu0 %v718
        %v720 = vpop.xlane.xlu0 %719
        %v721 = vsel %vm360, %v695, 0.0
        %722 = vadd.xlane.f32.xlu0 %v721
        %v723 = vpop.xlane.xlu0 %722
        %v724 = vsel %vm360, %v696, 0.0
        %725 = vadd.xlane.f32.xlu0 %v724
        %v726 = vpop.xlane.xlu0 %725
        %v727 = vsel %vm360, %v697, 0.0
        %728 = vadd.xlane.f32.xlu0 %v727
        %v729 = vpop.xlane.xlu0 %728
        %v730 = vsel %vm360, %v698, 0.0
        %731 = vadd.xlane.f32.xlu0 %v730
        %v732 = vpop.xlane.xlu0 %731
        %v733 = vsel %vm360, %v699, 0.0
        %734 = vadd.xlane.f32.xlu0 %v733
        %v735 = vpop.xlane.xlu0 %734
        %v736 = vsel %vm360, %v700, 0.0
        %737 = vadd.xlane.f32.xlu0 %v736
        %v738 = vpop.xlane.xlu0 %737
        %v739 = vsel %vm360, %v701, 0.0
        %740 = vadd.xlane.f32.xlu0 %v739
        %v741 = vpop.xlane.xlu0 %740
        %v742 = vsel %vm360, %v702, 0.0
        %743 = vadd.xlane.f32.xlu0 %v742
        %v744 = vpop.xlane.xlu0 %743
        %v745 = vsel %vm360, %v703, 0.0
        %746 = vadd.xlane.f32.xlu0 %v745
        %v747 = vpop.xlane.xlu0 %746
        %v748 = vsel %vm360, %v704, 0.0
        %749 = vadd.xlane.f32.xlu0 %v748
        %v750 = vpop.xlane.xlu0 %749
        %v751 = vsel %vm360, %v705, 0.0
        %752 = vadd.xlane.f32.xlu0 %v751
        %v753 = vpop.xlane.xlu0 %752
        %v754 = vld [vmem:[#allocation2] sm:$0x1]
        %756 = vset.pattern.permute.xlu0 0
        %757 = vperm.xlu0 %756, %v754
        %v758 = vpop.permute.xlu0 %757
        %v760 = vlaneseq
        %v761 = vshrl.u32 %v760, 7
        %v762 = vsub.s32 0, %v761
        %v763 = vrot.slane %v758, %v762
        %v764 = vadd.f32 %v708, %v763
        %v765 = vadd.f32 %v711, %v763
        %v766 = vadd.f32 %v714, %v763
        %v767 = vadd.f32 %v717, %v763
        %v768 = vadd.f32 %v720, %v763
        %v769 = vadd.f32 %v723, %v763
        %v770 = vadd.f32 %v726, %v763
        %v771 = vadd.f32 %v729, %v763
        %v772 = vadd.f32 %v732, %v763
        %v773 = vadd.f32 %v735, %v763
        %v774 = vadd.f32 %v738, %v763
        %v775 = vadd.f32 %v741, %v763
        %v776 = vadd.f32 %v744, %v763
        %v777 = vadd.f32 %v747, %v763
        %v778 = vadd.f32 %v750, %v763
        %v779 = vadd.f32 %v753, %v763
        %v796 = vlaneseq
        %v797 = vand.u32 %v796, 127
        %v798 = vlaneseq
        %v799 = vshrl.u32 %v798, 7
        %v800 = vsub.s32 %v797, %v799
        %v801 = vrot.slane %v764, %v800
        %v802 = vadd.s32 %v797, 4294967288
        %v803 = vlaneseq
        %v804 = vshrl.u32 %v803, 7
        %v805 = vsub.s32 %v802, %v804
        %v806 = vrot.slane %v765, %v805
        %vm807 = vcmask 130112
        %v808 = vsel %vm807, %v806, %v801
        %v809 = vadd.s32 %v797, 4294967280
        %v810 = vlaneseq
        %v811 = vshrl.u32 %v810, 7
        %v812 = vsub.s32 %v809, %v811
        %v813 = vrot.slane %v766, %v812
        %vm814 = vcmask 195712
        %v815 = vsel %vm814, %v813, %v808
        %v816 = vadd.s32 %v797, 4294967272
        %v817 = vlaneseq
        %v818 = vshrl.u32 %v817, 7
        %v819 = vsub.s32 %v816, %v818
        %v820 = vrot.slane %v767, %v819
        %vm821 = vcmask 261312
        %v822 = vsel %vm821, %v820, %v815
        %v823 = vadd.s32 %v797, 4294967264
        %v824 = vlaneseq
        %v825 = vshrl.u32 %v824, 7
        %v826 = vsub.s32 %v823, %v825
        %v827 = vrot.slane %v768, %v826
        %vm828 = vcmask 326912
        %v829 = vsel %vm828, %v827, %v822
        %v830 = vadd.s32 %v797, 4294967256
        %v831 = vlaneseq
        %v832 = vshrl.u32 %v831, 7
        %v833 = vsub.s32 %v830, %v832
        %v834 = vrot.slane %v769, %v833
        %vm835 = vcmask 392512
        %v836 = vsel %vm835, %v834, %v829
        %v837 = vadd.s32 %v797, 4294967248
        %v838 = vlaneseq
        %v839 = vshrl.u32 %v838, 7
        %v840 = vsub.s32 %v837, %v839
        %v841 = vrot.slane %v770, %v840
        %vm842 = vcmask 458112
        %v843 = vsel %vm842, %v841, %v836
        %v844 = vadd.s32 %v797, 4294967240
        %v845 = vlaneseq
        %v846 = vshrl.u32 %v845, 7
        %v847 = vsub.s32 %v844, %v846
        %v848 = vrot.slane %v771, %v847
        %vm849 = vcmask 523712
        %v850 = vsel %vm849, %v848, %v843
        %v851 = vadd.s32 %v797, 4294967232
        %v852 = vlaneseq
        %v853 = vshrl.u32 %v852, 7
        %v854 = vsub.s32 %v851, %v853
        %v855 = vrot.slane %v772, %v854
        %vm856 = vcmask 589312
        %v857 = vsel %vm856, %v855, %v850
        %v858 = vadd.s32 %v797, 4294967224
        %v859 = vlaneseq
        %v860 = vshrl.u32 %v859, 7
        %v861 = vsub.s32 %v858, %v860
        %v862 = vrot.slane %v773, %v861
        %vm863 = vcmask 654912
        %v864 = vsel %vm863, %v862, %v857
        %v865 = vadd.s32 %v797, 4294967216
        %v866 = vlaneseq
        %v867 = vshrl.u32 %v866, 7
        %v868 = vsub.s32 %v865, %v867
        %v869 = vrot.slane %v774, %v868
        %vm870 = vcmask 720512
        %v871 = vsel %vm870, %v869, %v864
        %v872 = vadd.s32 %v797, 4294967208
        %v873 = vlaneseq
        %v874 = vshrl.u32 %v873, 7
        %v875 = vsub.s32 %v872, %v874
        %v876 = vrot.slane %v775, %v875
        %vm877 = vcmask 786112
        %v878 = vsel %vm877, %v876, %v871
        %v879 = vadd.s32 %v797, 4294967200
        %v880 = vlaneseq
        %v881 = vshrl.u32 %v880, 7
        %v882 = vsub.s32 %v879, %v881
        %v883 = vrot.slane %v776, %v882
        %vm884 = vcmask 851712
        %v885 = vsel %vm884, %v883, %v878
        %v886 = vadd.s32 %v797, 4294967192
        %v887 = vlaneseq
        %v888 = vshrl.u32 %v887, 7
        %v889 = vsub.s32 %v886, %v888
        %v890 = vrot.slane %v777, %v889
        %vm891 = vcmask 917312
        %v892 = vsel %vm891, %v890, %v885
        %v893 = vadd.s32 %v797, 4294967184
        %v894 = vlaneseq
        %v895 = vshrl.u32 %v894, 7
        %v896 = vsub.s32 %v893, %v895
        %v897 = vrot.slane %v778, %v896
        %vm898 = vcmask 982912
        %v899 = vsel %vm898, %v897, %v892
        %v900 = vadd.s32 %v797, 4294967176
        %v901 = vlaneseq
        %v902 = vshrl.u32 %v901, 7
        %v903 = vsub.s32 %v900, %v902
        %v904 = vrot.slane %v779, %v903
        %vm905 = vcmask 1048512
        %v906 = vsel %vm905, %v904, %v899
        %908 = vst [vmem:[%s273] sm:$0x1] %v906
        %s909 = sand.u32 %s183, 1
        %s910 = scalar_lea.sflag [#allocation4], %s909
        %s911 = sand.u32 %s183, 1
        %s912 = scalar_lea.vmem [#allocation3], %s911
        // Predicated region
        $region49: #{tpu_custom_call.1} parent=47 // pred_check
          %p913 = pneg %p193
        $region50: #{tpu_custom_call.1} parent=47 // pred_check_branch
          %915 = sbr.rel (%p913) target = $region52
        $region51: #{tpu_custom_call.1} parent=47 // pred_region
          %s917 = ssub.s32 16, 16
          %918 = vsyncadd %s910, %s917
          %s919 = smul.addr %s23, 16
          %s920 = scalar_lea.hbm %s7, %s919
          %s922 = sshll.u32 %s912, 4
          %s923 = int_to_ptr.vmem [resolvable:$true] %s922
          %925 = dma.vmem_to_hbm [thread:$0]  %s923, 16, %s920, %s910
        $region52: #{tpu_custom_call.1} parent=47 // pred_fallthru
          _
      $region48: #{tpu_custom_call.1} parent=5 // pred_fallthru
        _
      %p926 = scmp.le.s32.totalorder 2, %s18
      // Predicated region
      $region53: #{tpu_custom_call.1} parent=5 // pred_check
        %p927 = pneg %p926
      $region54: #{tpu_custom_call.1} parent=5 // pred_check_branch
        %929 = sbr.rel (%p927) target = $region56
      $region55: #{tpu_custom_call.1} parent=5 // pred_region
        %s930 = ssub.s32 %s18, 2
        // Predicated region
        $region57: #{tpu_custom_call.1} parent=55 // pred_check
          %p931 = pneg %p199
        $region58: #{tpu_custom_call.1} parent=55 // pred_check_branch
          %933 = sbr.rel (%p931) target = $region60
        $region59: #{tpu_custom_call.1} parent=55 // pred_region
          %s934 = sand.u32 %s184, 1
          %s935 = scalar_lea.sflag [#allocation4], %s934
          %s936 = sand.u32 %s184, 1
          %s937 = scalar_lea.vmem [#allocation3], %s936
          %938 = dma.done %s935, 16
        $region60: #{tpu_custom_call.1} parent=55 // pred_fallthru
          _
      $region56: #{tpu_custom_call.1} parent=5 // pred_fallthru
        _
    $region6: #{tpu_custom_call.1} parent=1 // loop_footer
      %s22 = sadd.s32 1, %s18
    $region7: #{tpu_custom_call.1} parent=1 // loop_footer_branch
      %17 = sbr.rel target = $region3
    $region8: #{tpu_custom_call.1} parent=1 // loop_exit
      _
    %939 = vsyncpa [#allocation4], 1
    %s940 = scalar_lea.sflag [#allocation4], 1
    %941 = vsyncpa %s940, 1

</llo_original>
